<compile_context>
chip_gen: v6e
topology: v6e:2x2x1
jax: 0.10.0
libtpu: 0.0.40
codegen_flags: <defaults>
</compile_context>

<pallas_src>
import functools

import jax
import jax.numpy as jnp
from jax.experimental import pallas as pl
from jax.experimental.pallas import tpu as pltpu


def _round_up(v, m):
    return (v + m - 1) // m * m


def _vmem_capacity_bytes():
    try:
        info = pltpu.get_tpu_info()
        cap = getattr(info, "vmem_capacity_bytes", None)
        if cap:
            return int(cap)
    except Exception:
        pass
    return 64 * 1024 * 1024  # conservative (v7x-sized) default


def _budgets():
    """(per-block streaming budget, scoped vmem limit) sized per TPU generation."""
    cap = _vmem_capacity_bytes()
    if cap >= 128 * 1024 * 1024:                     # v5e / v6e: 128 MiB physical VMEM
        return 16 * 1024 * 1024, 64 * 1024 * 1024
    return 8 * 1024 * 1024, 32 * 1024 * 1024         # v7x: 64 MiB physical VMEM


def _pick_hw_tile(C, HW, itemsize, block_budget):
    """Full-dim HW block if it fits the budget, else the largest multiple-of-128 tile."""
    if C * HW * itemsize <= block_budget:
        return HW
    row_bytes = C * itemsize
    hw_tile = max(128, (block_budget // row_bytes) // 128 * 128)
    return int(min(hw_tile, _round_up(HW, 128)))


# --------------------------------------------------------------------------- #
# Kernel 1: channel attention (tiled pooling over HW + shared MLP + fusion + sigmoid)
# --------------------------------------------------------------------------- #
def _channel_attn_kernel(x_ref, w1t_ref, w2t_ref, fw_ref, out_ref,
                         sum_acc, max_acc, *, hw_total, hw_tile, n_hw, acc_w):
    # x_ref   : (b_tile, C, hw_tile)  native dtype
    # w1t_ref : (C, Cr), w2t_ref: (Cr, C), fw_ref: (2, C)  float32 (VMEM resident)
    # out_ref : (1, b_tile, C) float32
    # sum_acc / max_acc : (b_tile, C, acc_w) float32 VMEM scratch (per-lane partials)
    k = pl.program_id(1)

    @pl.when(k == 0)
    def _init():
        sum_acc[...] = jnp.zeros(sum_acc.shape, sum_acc.dtype)
        max_acc[...] = jnp.full(max_acc.shape, -jnp.inf, max_acc.dtype)

    def accum(off, width):
        # Unmasked accumulate of one chunk loaded straight from the ref (bounded vreg
        # pressure; vld co-issues with the VPU add/max).
        chunk = x_ref[:, :, pl.ds(off, width)].astype(jnp.float32)
        sum_acc[:, :, :width] += chunk
        max_acc[:, :, :width] = jnp.maximum(max_acc[:, :, :width], chunk)

    def accum_masked(off, valid):
        # acc_w-wide chunk whose first `valid` lanes only are in range (tail of the
        # last HW block): sum uses a 0 fill, max uses a -inf fill.
        chunk = x_ref[:, :, pl.ds(off, acc_w)].astype(jnp.float32)
        lane = jax.lax.broadcasted_iota(jnp.int32, chunk.shape, dimension=2)
        ok = lane < valid
        sum_acc[...] += jnp.where(ok, chunk, 0.0)
        max_acc[...] = jnp.maximum(max_acc[...], jnp.where(ok, chunk, -jnp.inf))

    def run_chunks(n_full):
        if n_full <= 0:
            return
        if n_full <= 8:
            for i in range(n_full):
                accum(i * acc_w, acc_w)
        else:
            def body(i, carry):
                accum(pl.multiple_of(i * acc_w, 128), acc_w)
                return carry
            jax.lax.fori_loop(0, n_full, body, 0)

    if n_hw == 1:
        # Single full-dim block: every lane is real data, no masking anywhere.
        n_full = hw_tile // acc_w
        run_chunks(n_full)
        tail = hw_tile - n_full * acc_w
        if tail:
            accum(n_full * acc_w, tail)
    else:
        rem = hw_total - (n_hw - 1) * hw_tile      # valid lanes in the last block (static)
        is_last = k == n_hw - 1
        if rem == hw_tile:
            run_chunks(hw_tile // acc_w)           # every block is full, no masking
        else:
            pl.when(k < n_hw - 1)(lambda: run_chunks(hw_tile // acc_w))

            def _tail_block():
                n_full = rem // acc_w
                run_chunks(n_full)
                partial = rem - n_full * acc_w
                if partial:
                    accum_masked(n_full * acc_w, partial)

            pl.when(is_last)(_tail_block)

    @pl.when(k == n_hw - 1)
    def _finalize():
        # One cross-lane (XLU) reduce per row block, one stacked avg/max MLP pass.
        avg_pool = jnp.sum(sum_acc[...], axis=-1) * (1.0 / float(hw_total))   # (bt, C)
        max_pool = jnp.max(max_acc[...], axis=-1)                             # (bt, C)
        bt = avg_pool.shape[0]
        pooled = jnp.concatenate([avg_pool, max_pool], axis=0)                # (2bt, C)
        h = jnp.dot(pooled, w1t_ref[...], preferred_element_type=jnp.float32)
        h = jnp.maximum(h, 0.0)
        o = jnp.dot(h, w2t_ref[...], preferred_element_type=jnp.float32)
        fw = fw_ref[...]                                                      # (2, C)
        fused = o[:bt, :] * fw[0:1, :] + o[bt:, :] * fw[1:2, :]               # grouped 1x1
        out_ref[0] = jax.nn.sigmoid(fused).astype(out_ref.dtype)


def channel_attention(x_nchw, w1, w2, fusion_w, *, block_budget, vmem_limit):
    """x: (B,C,H,W); w1: (Cr,C); w2: (C,Cr); fusion_w: (C,2). Returns (B,C) f32."""
    B, C, H, W = x_nchw.shape
    HW = H * W
    x3 = x_nchw.reshape(B, C, HW)               # free reshape, NO dtype cast
    w1t = jnp.asarray(w1, jnp.float32).T        # (C, Cr)
    w2t = jnp.asarray(w2, jnp.float32).T        # (Cr, C)
    fw = jnp.asarray(fusion_w, jnp.float32).T   # (2, C): row0 avg, row1 max
    Cr = w1t.shape[1]
    itemsize = jnp.dtype(x3.dtype).itemsize

    hw_tile = _pick_hw_tile(C, HW, itemsize, block_budget)
    if hw_tile == HW:
        # Whole image per block: grow the batch tile instead (bigger DMAs, fewer grid
        # steps, wider finalize matmul).
        b_tile = 1
        for bt in range(1, B + 1):
            if B % bt == 0 and bt * C * HW * itemsize <= block_budget:
                b_tile = bt
    else:
        b_tile = 1

    # per-chunk accumulation width (~32K elements per chunk keeps vregs bounded)
    acc_w = max(128, (32768 // max(b_tile * C, 1)) // 128 * 128)
    acc_w = int(min(acc_w, _round_up(hw_tile, 128)))
    if hw_tile != HW:
        hw_tile = max(acc_w, (hw_tile // acc_w) * acc_w)   # keep hw_tile % acc_w == 0

    n_rb = B // b_tile
    n_hw = int(pl.cdiv(HW, hw_tile))

    kernel = functools.partial(_channel_attn_kernel, hw_total=HW, hw_tile=hw_tile,
                               n_hw=n_hw, acc_w=acc_w)
    out = pl.pallas_call(
        kernel,
        out_shape=jax.ShapeDtypeStruct((n_rb, b_tile, C), jnp.float32),
        grid_spec=pltpu.PrefetchScalarGridSpec(
            num_scalar_prefetch=0,
            grid=(n_rb, n_hw),
            in_specs=[
                pl.BlockSpec((b_tile, C, hw_tile), lambda i, k: (i, 0, k)),
                pl.BlockSpec((C, Cr), lambda i, k: (0, 0)),
                pl.BlockSpec((Cr, C), lambda i, k: (0, 0)),
                pl.BlockSpec((2, C), lambda i, k: (0, 0)),
            ],
            out_specs=pl.BlockSpec((1, b_tile, C), lambda i, k: (i, 0, 0)),
            scratch_shapes=[pltpu.VMEM((b_tile, C, acc_w), jnp.float32),
                            pltpu.VMEM((b_tile, C, acc_w), jnp.float32)],
        ),
        compiler_params=pltpu.CompilerParams(
            dimension_semantics=("parallel", "arbitrary"),
            vmem_limit_bytes=vmem_limit),
    )(x3, w1t, w2t, fw)
    return out.reshape(B, C)


# --------------------------------------------------------------------------- #
# Kernel 2: channel-wise mean/max maps of y = ca*x  (y never written to HBM)
# --------------------------------------------------------------------------- #
def _ca_maps_kernel(x_ref, ca_ref, maps_ref, *, hw_tile):
    # x_ref: (1, C, hw_tile); ca_ref: (1, C, 1) f32; maps_ref: (1, 2, hw_tile) f32
    C = x_ref.shape[1]
    ca = ca_ref[0]                                        # (C, 1)
    cw = max(128, min(_round_up(hw_tile, 128), (32768 // max(C, 1)) // 128 * 128))

    def do_chunk(off, width):
        y = x_ref[0, :, pl.ds(off, width)].astype(jnp.float32) * ca     # (C, width)
        maps_ref[0, 0:1, pl.ds(off, width)] = jnp.mean(y, axis=0, keepdims=True)
        maps_ref[0, 1:2, pl.ds(off, width)] = jnp.max(y, axis=0, keepdims=True)

    n_full = hw_tile // cw
    if 0 < n_full <= 8:
        for i in range(n_full):
            do_chunk(i * cw, cw)
    elif n_full > 8:
        def body(i, carry):
            do_chunk(pl.multiple_of(i * cw, 128), cw)
            return carry
        jax.lax.fori_loop(0, n_full, body, 0)
    tail = hw_tile - n_full * cw
    if tail:
        do_chunk(n_full * cw, tail)


def ca_apply_maps(x3, ca3, *, block_budget, vmem_limit):
    """Returns (B, 2, HW) f32 [mean_C(ca*x), max_C(ca*x)]."""
    B, C, HW = x3.shape
    itemsize = jnp.dtype(x3.dtype).itemsize
    hw_tile = _pick_hw_tile(C, HW, itemsize, block_budget)
    n_hw = int(pl.cdiv(HW, hw_tile))
    kernel = functools.partial(_ca_maps_kernel, hw_tile=hw_tile)
    return pl.pallas_call(
        kernel,
        out_shape=jax.ShapeDtypeStruct((B, 2, HW), jnp.float32),
        grid=(B, n_hw),
        in_specs=[pl.BlockSpec((1, C, hw_tile), lambda b, k: (b, 0, k)),
                  pl.BlockSpec((1, C, 1), lambda b, k: (b, 0, 0))],
        out_specs=pl.BlockSpec((1, 2, hw_tile), lambda b, k: (b, 0, k)),
        compiler_params=pltpu.CompilerParams(
            dimension_semantics=("parallel", "parallel"),
            vmem_limit_bytes=vmem_limit),
    )(x3, ca3)


# --------------------------------------------------------------------------- #
# Kernel 3: spatial attention (5x5 dilated conv via lane rolls) + final multiply
# --------------------------------------------------------------------------- #
def _spatial_apply_kernel(maps_ref, ca_ref, x_ref, w_ref, b_ref, o_ref, sa_scr,
                          *, H, W):
    # maps_ref: (1, 2, HW) f32 (full spatial extent, resident across C tiles)
    # ca_ref  : (1, c_tile, 1) f32; x_ref/o_ref: (1, c_tile, HW) lane-dense
    # w_ref   : (2, 25) f32 SMEM; b_ref: (1,) f32 SMEM; sa_scr: (1, HW) f32 VMEM
    HW = H * W
    c_tile = x_ref.shape[1]
    j = pl.program_id(1)

    @pl.when(j == 0)
    def _compute_sa():
        # 5x5 dilation-2 conv on the lane-dense maps: each tap is an XLU lane roll plus
        # a validity mask (implements the padding=4 halo; no host-side jnp.pad needed).
        # Note: for HW that is not a multiple of 128 the roll goes through Mosaic's
        # generic relayout path (slower but still once per batch).
        m = maps_ref[0]                                               # (2, HW)
        pos = jax.lax.broadcasted_iota(jnp.int32, (1, HW), dimension=1)
        row = pos // W
        col = pos - row * W
        acc = jnp.zeros((1, HW), jnp.float32) + b_ref[0]
        for i in range(5):
            dy = 2 * i - 4
            rv = jnp.logical_and(row + dy >= 0, row + dy < H)
            for jj in range(5):
                dx = 2 * jj - 4
                cv = jnp.logical_and(col + dx >= 0, col + dx < W)
                ok = jnp.logical_and(rv, cv)
                t = i * 5 + jj
                off = dy * W + dx
                if off == 0:
                    shifted = m
                else:
                    # shifted[:, p] = m[:, p + off]  (wrapped values are masked off)
                    shifted = pltpu.roll(m, shift=(-off) % HW, axis=1)
                tap = w_ref[0, t] * shifted[0:1, :] + w_ref[1, t] * shifted[1:2, :]
                acc = acc + jnp.where(ok, tap, 0.0)
        sa_scr[...] = jax.nn.sigmoid(acc)

    ca = ca_ref[0]                                                     # (c_tile, 1)
    cw = max(128, min(_round_up(HW, 128), (32768 // max(c_tile, 1)) // 128 * 128))

    def do_chunk(off, width):
        xs = x_ref[0, :, pl.ds(off, width)].astype(jnp.float32)
        s = sa_scr[0:1, pl.ds(off, width)]
        o_ref[0, :, pl.ds(off, width)] = (xs * ca * s).astype(o_ref.dtype)

    n_full = HW // cw
    if 0 < n_full <= 8:
        for i in range(n_full):
            do_chunk(i * cw, cw)
    elif n_full > 8:
        def body(i, carry):
            do_chunk(pl.multiple_of(i * cw, 128), cw)
            return carry
        jax.lax.fori_loop(0, n_full, body, 0)
    tail = HW - n_full * cw
    if tail:
        do_chunk(n_full * cw, tail)


def spatial_apply(x3, ca3, maps, sa_w, sa_b, H, W, *, block_budget, vmem_limit):
    B, C, HW = x3.shape
    itemsize = jnp.dtype(x3.dtype).itemsize
    per_c_bytes = 2 * HW * itemsize                       # x block + out block per channel
    cands = sorted({C} | {d for d in range(8, C, 8) if C % d == 0}, reverse=True)
    c_tile = next((ct for ct in cands if ct * per_c_bytes <= block_budget), None)
    if c_tile is None:
        c_tile = 8 if C % 8 == 0 else C
    n_ct = C // c_tile

    sw = jnp.asarray(sa_w, jnp.float32).reshape(2, 25)    # (cin, 5*5)
    sb = jnp.asarray(sa_b, jnp.float32).reshape(1)
    kernel = functools.partial(_spatial_apply_kernel, H=H, W=W)
    return pl.pallas_call(
        kernel,
        out_shape=jax.ShapeDtypeStruct((B, C, HW), x3.dtype),
        grid=(B, n_ct),
        in_specs=[
            pl.BlockSpec((1, 2, HW), lambda b, j: (b, 0, 0)),
            pl.BlockSpec((1, c_tile, 1), lambda b, j: (b, j, 0)),
            pl.BlockSpec((1, c_tile, HW), lambda b, j: (b, j, 0)),
            pl.BlockSpec(memory_space=pltpu.MemorySpace.SMEM),
            pl.BlockSpec(memory_space=pltpu.MemorySpace.SMEM),
        ],
        out_specs=pl.BlockSpec((1, c_tile, HW), lambda b, j: (b, j, 0)),
        scratch_shapes=[pltpu.VMEM((1, HW), jnp.float32)],
        compiler_params=pltpu.CompilerParams(
            dimension_semantics=("parallel", "arbitrary"),
            vmem_limit_bytes=vmem_limit),
    )(maps, ca3, x3, sw, sb)


# --------------------------------------------------------------------------- #
# Full CBAM forward
# --------------------------------------------------------------------------- #
def cbam_forward(x, w1, w2, fusion_w, sa_w, sa_b):
    """x -> ca*x -> sa*(ca*x); the intermediate y = ca*x never touches HBM."""
    B, C, H, W = x.shape
    HW = H * W
    block_budget, vmem_limit = _budgets()

    ca = channel_attention(x, w1, w2, fusion_w,
                           block_budget=block_budget, vmem_limit=vmem_limit)   # (B, C)
    x3 = x.reshape(B, C, HW)
    ca3 = ca.reshape(B, C, 1)
    maps = ca_apply_maps(x3, ca3, block_budget=block_budget, vmem_limit=vmem_limit)
    out3 = spatial_apply(x3, ca3, maps, sa_w, sa_b, H, W,
                         block_budget=block_budget, vmem_limit=vmem_limit)
    return out3.reshape(B, C, H, W)


# --------------------------------------------------------------------------- #
# Pure-JAX reference mirroring the PyTorch forward
# --------------------------------------------------------------------------- #
def _reference(x, w1, w2, fusion_w, sa_w, sa_b):
    avg = jnp.mean(x, axis=(2, 3))
    mx = jnp.max(x, axis=(2, 3))

    def mlp(v):
        return jnp.maximum(v @ w1.T, 0.0) @ w2.T

    fused = mlp(avg) * fusion_w[:, 0][None, :] + mlp(mx) * fusion_w[:, 1][None, :]
    ca = jax.nn.sigmoid(fused)[:, :, None, None]
    y = ca * x
    m = jnp.concatenate([jnp.mean(y, axis=1, keepdims=True),
                         jnp.max(y, axis=1, keepdims=True)], axis=1)
    s = jax.lax.conv_general_dilated(
        m, sa_w, window_strides=(1, 1), padding=((4, 4), (4, 4)),
        rhs_dilation=(2, 2), dimension_numbers=("NCHW", "OIHW", "NCHW"))
    sa = jax.nn.sigmoid(s + sa_b.reshape(1, 1, 1, 1))
    return sa * y


if __name__ == "__main__":
    B, C, H, W = 2, 4, 16, 16
    ratio = 1
    Cr = C // ratio

    key = jax.random.PRNGKey(0)
    kx, k1, k2, k3, k4 = jax.random.split(key, 5)
    x = jax.random.normal(kx, (B, C, H, W), dtype=jnp.float32)

    # Conv2d(C, C//ratio, 1, bias=False) -> (Cr, C); Conv2d(C//ratio, C, 1, bias=False) -> (C, Cr)
    w1 = jax.random.normal(k1, (Cr, C), dtype=jnp.float32) * 0.5
    w2 = jax.random.normal(k2, (C, Cr), dtype=jnp.float32) * 0.5
    # fusion: Conv2d(2C, C, 1, groups=C, bias=False), weight filled with 1.0 -> (C, 2)
    fusion_w = jnp.ones((C, 2), dtype=jnp.float32)
    # spatial conv: Conv2d(2, 1, 5, dilation=2, padding=4) with bias
    sa_w = jax.random.normal(k3, (1, 2, 5, 5), dtype=jnp.float32) * 0.2
    sa_b = jax.random.normal(k4, (1,), dtype=jnp.float32) * 0.1

    out = cbam_forward(x, w1, w2, fusion_w, sa_w, sa_b)
    out = jax.block_until_ready(out)

    ref = _reference(x, w1, w2, fusion_w, sa_w, sa_b)
    assert out.shape == (B, C, H, W)
    err = float(jnp.max(jnp.abs(out - ref)))
    assert err < 1e-4, f"max abs err {err}"
    print("KERNEL_OK")
</pallas_src>

<mosaic_0001>
module attributes {stable_mosaic.version = 11 : i64} {
  func.func @_channel_attn_kernel(%arg0: i32, %arg1: i32, %arg2: memref<2x4x256xf32, #tpu.memory_space<vmem>>, %arg3: memref<4x4xf32, #tpu.memory_space<vmem>>, %arg4: memref<4x4xf32, #tpu.memory_space<vmem>>, %arg5: memref<2x4xf32, #tpu.memory_space<vmem>>, %arg6: memref<1x2x4xf32, #tpu.memory_space<vmem>>, %arg7: memref<2x4x256xf32, #tpu.memory_space<vmem>>, %arg8: memref<2x4x256xf32, #tpu.memory_space<vmem>>) attributes {dimension_semantics = [#tpu.dimension_semantics<parallel>, #tpu.dimension_semantics<arbitrary>], iteration_bounds = array<i64: 1, 1>, scalar_prefetch = 0 : i64, scratch_operands = 2 : i64, tpu.core_type = #tpu.core_type<tc>, window_params = [{transform_indices = @transform_0, window_bounds = array<i64: 2, 4, 256>}, {pipeline_mode = #tpu.pipeline_mode<synchronous>, transform_indices = @transform_1, window_bounds = array<i64: 4, 4>}, {pipeline_mode = #tpu.pipeline_mode<synchronous>, transform_indices = @transform_2, window_bounds = array<i64: 4, 4>}, {pipeline_mode = #tpu.pipeline_mode<synchronous>, transform_indices = @transform_3, window_bounds = array<i64: 2, 4>}, {transform_indices = @transform_4, window_bounds = array<i64: 1, 2, 4>}]} {
    %c0_i32 = arith.constant 0 : i32
    %0 = arith.cmpi eq, %arg1, %c0_i32 : i32
    %1 = arith.extui %0 : i1 to i32
    %c0_i32_0 = arith.constant 0 : i32
    %2 = arith.cmpi ne, %1, %c0_i32_0 : i32
    scf.if %2 {
      %cst = arith.constant 0.000000e+00 : f32
      %13 = vector.broadcast %cst : f32 to vector<2x4x256xf32>
      %c0_17 = arith.constant 0 : index
      %c0_18 = arith.constant 0 : index
      %c0_19 = arith.constant 0 : index
      %14 = vector.load %arg7[%c0_17, %c0_18, %c0_19] : memref<2x4x256xf32, #tpu.memory_space<vmem>>, vector<2x4x256xf32>
      tpu.vector_store %arg7[%c0_17, %c0_18, %c0_19], %13 {strides = array<i32>} : memref<2x4x256xf32, #tpu.memory_space<vmem>>, vector<2x4x256xf32>,
      %cst_20 = arith.constant 0xFF800000 : f32
      %15 = vector.broadcast %cst_20 : f32 to vector<2x4x256xf32>
      %c0_21 = arith.constant 0 : index
      %c0_22 = arith.constant 0 : index
      %c0_23 = arith.constant 0 : index
      %16 = vector.load %arg8[%c0_21, %c0_22, %c0_23] : memref<2x4x256xf32, #tpu.memory_space<vmem>>, vector<2x4x256xf32>
      tpu.vector_store %arg8[%c0_21, %c0_22, %c0_23], %15 {strides = array<i32>} : memref<2x4x256xf32, #tpu.memory_space<vmem>>, vector<2x4x256xf32>,
    } else {
    }
    %c0 = arith.constant 0 : index
    %c0_1 = arith.constant 0 : index
    %c0_2 = arith.constant 0 : index
    %3 = vector.load %arg2[%c0, %c0_1, %c0_2] : memref<2x4x256xf32, #tpu.memory_space<vmem>>, vector<2x4x256xf32>
    %c0_3 = arith.constant 0 : index
    %c0_4 = arith.constant 0 : index
    %c0_5 = arith.constant 0 : index
    %4 = vector.load %arg7[%c0_3, %c0_4, %c0_5] : memref<2x4x256xf32, #tpu.memory_space<vmem>>, vector<2x4x256xf32>
    %5 = arith.addf %4, %3 : vector<2x4x256xf32>
    %c0_6 = arith.constant 0 : index
    %c0_7 = arith.constant 0 : index
    %c0_8 = arith.constant 0 : index
    %6 = vector.load %arg7[%c0_6, %c0_7, %c0_8] : memref<2x4x256xf32, #tpu.memory_space<vmem>>, vector<2x4x256xf32>
    tpu.vector_store %arg7[%c0_6, %c0_7, %c0_8], %5 {strides = array<i32>} : memref<2x4x256xf32, #tpu.memory_space<vmem>>, vector<2x4x256xf32>,
    %c0_9 = arith.constant 0 : index
    %c0_10 = arith.constant 0 : index
    %c0_11 = arith.constant 0 : index
    %7 = vector.load %arg8[%c0_9, %c0_10, %c0_11] : memref<2x4x256xf32, #tpu.memory_space<vmem>>, vector<2x4x256xf32>
    %8 = arith.maximumf %7, %3 : vector<2x4x256xf32>
    %c0_12 = arith.constant 0 : index
    %c0_13 = arith.constant 0 : index
    %c0_14 = arith.constant 0 : index
    %9 = vector.load %arg8[%c0_12, %c0_13, %c0_14] : memref<2x4x256xf32, #tpu.memory_space<vmem>>, vector<2x4x256xf32>
    tpu.vector_store %arg8[%c0_12, %c0_13, %c0_14], %8 {strides = array<i32>} : memref<2x4x256xf32, #tpu.memory_space<vmem>>, vector<2x4x256xf32>,
    %c0_i32_15 = arith.constant 0 : i32
    %10 = arith.cmpi eq, %arg1, %c0_i32_15 : i32
    %11 = arith.extui %10 : i1 to i32
    %c0_i32_16 = arith.constant 0 : i32
    %12 = arith.cmpi ne, %11, %c0_i32_16 : i32
    scf.if %12 {
      %c0_17 = arith.constant 0 : index
      %c0_18 = arith.constant 0 : index
      %c0_19 = arith.constant 0 : index
      %13 = vector.load %arg7[%c0_17, %c0_18, %c0_19] : memref<2x4x256xf32, #tpu.memory_space<vmem>>, vector<2x4x256xf32>
      %cst = arith.constant dense<0.000000e+00> : vector<2x4xf32>
      %14 = vector.multi_reduction <add>, %13, %cst [2] : vector<2x4x256xf32> to vector<2x4xf32>
      %cst_20 = arith.constant 3.906250e-03 : f32
      %15 = vector.broadcast %cst_20 : f32 to vector<2x4xf32>
      %16 = arith.mulf %14, %15 : vector<2x4xf32>
      %c0_21 = arith.constant 0 : index
      %c0_22 = arith.constant 0 : index
      %c0_23 = arith.constant 0 : index
      %17 = vector.load %arg8[%c0_21, %c0_22, %c0_23] : memref<2x4x256xf32, #tpu.memory_space<vmem>>, vector<2x4x256xf32>
      %cst_24 = arith.constant dense<0xFF800000> : vector<2x4xf32>
      %18 = vector.multi_reduction <maximumf>, %17, %cst_24 [2] : vector<2x4x256xf32> to vector<2x4xf32>
      %19 = tpu.concatenate %16, %18 in 0 : vector<2x4xf32>, vector<2x4xf32> -> vector<4x4xf32>
      %c0_25 = arith.constant 0 : index
      %c0_26 = arith.constant 0 : index
      %20 = vector.load %arg3[%c0_25, %c0_26] : memref<4x4xf32, #tpu.memory_space<vmem>>, vector<4x4xf32>
      %cst_27 = arith.constant dense<0.000000e+00> : vector<4x4xf32>
      %21 = tpu.matmul %19, %20, %cst_27 {dimension_numbers = #tpu.dot_dimension_numbers<[1], [0], [0], [1], [0, 0, 1, 1], [], []>} : vector<4x4xf32>, vector<4x4xf32>, vector<4x4xf32> -> vector<4x4xf32>
      %cst_28 = arith.constant 0.000000e+00 : f32
      %22 = vector.broadcast %cst_28 : f32 to vector<4x4xf32>
      %23 = arith.maximumf %21, %22 : vector<4x4xf32>
      %c0_29 = arith.constant 0 : index
      %c0_30 = arith.constant 0 : index
      %24 = vector.load %arg4[%c0_29, %c0_30] : memref<4x4xf32, #tpu.memory_space<vmem>>, vector<4x4xf32>
      %cst_31 = arith.constant dense<0.000000e+00> : vector<4x4xf32>
      %25 = tpu.matmul %23, %24, %cst_31 {dimension_numbers = #tpu.dot_dimension_numbers<[1], [0], [0], [1], [0, 0, 1, 1], [], []>} : vector<4x4xf32>, vector<4x4xf32>, vector<4x4xf32> -> vector<4x4xf32>
      %c0_32 = arith.constant 0 : index
      %c0_33 = arith.constant 0 : index
      %26 = vector.load %arg5[%c0_32, %c0_33] : memref<2x4xf32, #tpu.memory_space<vmem>>, vector<2x4xf32>
      %27 = vector.extract_strided_slice %25 {offsets = [0, 0], sizes = [2, 4], strides = [1, 1]} : vector<4x4xf32> to vector<2x4xf32>
      %28 = vector.extract_strided_slice %26 {offsets = [0, 0], sizes = [1, 4], strides = [1, 1]} : vector<2x4xf32> to vector<1x4xf32>
      %29 = vector.broadcast %28 : vector<1x4xf32> to vector<2x4xf32>
      %30 = arith.mulf %27, %29 : vector<2x4xf32>
      %31 = vector.extract_strided_slice %25 {offsets = [2, 0], sizes = [2, 4], strides = [1, 1]} : vector<4x4xf32> to vector<2x4xf32>
      %32 = vector.extract_strided_slice %26 {offsets = [1, 0], sizes = [1, 4], strides = [1, 1]} : vector<2x4xf32> to vector<1x4xf32>
      %33 = vector.broadcast %32 : vector<1x4xf32> to vector<2x4xf32>
      %34 = arith.mulf %31, %33 : vector<2x4xf32>
      %35 = arith.addf %30, %34 : vector<2x4xf32>
      %36 = arith.negf %35 : vector<2x4xf32>
      %37 = math.exp %36 : vector<2x4xf32>
      %cst_34 = arith.constant 1.000000e+00 : f32
      %38 = vector.broadcast %cst_34 : f32 to vector<2x4xf32>
      %39 = arith.addf %38, %37 : vector<2x4xf32>
      %40 = arith.divf %38, %39 : vector<2x4xf32>
      %c0_35 = arith.constant 0 : index
      %c0_36 = arith.constant 0 : index
      %c0_37 = arith.constant 0 : index
      %41 = vector.load %arg6[%c0_35, %c0_36, %c0_37] : memref<1x2x4xf32, #tpu.memory_space<vmem>>, vector<1x2x4xf32>
      %42 = vector.shape_cast %41 : vector<1x2x4xf32> to vector<2x4xf32>
      %43 = vector.shape_cast %40 : vector<2x4xf32> to vector<1x2x4xf32>
      tpu.vector_store %arg6[%c0_35, %c0_36, %c0_37], %43 {strides = array<i32>} : memref<1x2x4xf32, #tpu.memory_space<vmem>>, vector<1x2x4xf32>,
    } else {
    }
    return
  }
  func.func @transform_0(%arg0: i32, %arg1: i32) -> (i32, i32, i32) {
    %c0_i32 = arith.constant 0 : i32
    %c0_i32_0 = arith.constant 0 : i32
    return %arg0, %c0_i32, %arg1 : i32, i32, i32
  }
  func.func @transform_1(%arg0: i32, %arg1: i32) -> (i32, i32) {
    %c0_i32 = arith.constant 0 : i32
    %c0_i32_0 = arith.constant 0 : i32
    %c0_i32_1 = arith.constant 0 : i32
    return %c0_i32, %c0_i32_0 : i32, i32
  }
  func.func @transform_2(%arg0: i32, %arg1: i32) -> (i32, i32) {
    %c0_i32 = arith.constant 0 : i32
    %c0_i32_0 = arith.constant 0 : i32
    %c0_i32_1 = arith.constant 0 : i32
    return %c0_i32, %c0_i32_0 : i32, i32
  }
  func.func @transform_3(%arg0: i32, %arg1: i32) -> (i32, i32) {
    %c0_i32 = arith.constant 0 : i32
    %c0_i32_0 = arith.constant 0 : i32
    %c0_i32_1 = arith.constant 0 : i32
    return %c0_i32, %c0_i32_0 : i32, i32
  }
  func.func @transform_4(%arg0: i32, %arg1: i32) -> (i32, i32, i32) {
    %c0_i32 = arith.constant 0 : i32
    %c0_i32_0 = arith.constant 0 : i32
    %c0_i32_1 = arith.constant 0 : i32
    return %arg0, %c0_i32, %c0_i32_0 : i32, i32, i32
  }
}

</mosaic_0001>

<llo_original>
// kernel: tpu_custom_call.1
$region0: #{tpu_custom_call.1}
  #allocation0 [shape = 'u32[]', space=smem, size = 0x4, offset = 0x4, fixed_abs, tag = 'smem constant byte address 0x4 - core index']
  #allocation1 [shape = 'u32[144,128]{1,0:T(1,128)}', space=vmem, size = 0x12000, scoped, tag = 'internal scratch']
  #allocation2 [shape = 'f32[2,4,256]{2,1,0:T(4,128)}', space=vmem, size = 0x2000, scoped, tag = 'scratch operand']
  #allocation3 [shape = 'f32[2,4,256]{2,1,0:T(4,128)}', space=vmem, size = 0x2000, scoped, tag = 'scratch operand']
  %s0 = inlined_call_operand.hbm [shape: f32[2,4,256], index: 0, kind: input, shape index: {}]
  %s1 = inlined_call_operand.hbm [shape: f32[4,4], index: 1, kind: input, shape index: {}]
  %s2 = inlined_call_operand.hbm [shape: f32[4,4], index: 2, kind: input, shape index: {}]
  %s3 = inlined_call_operand.vmem [shape: f32[2,4], index: 3, kind: input, shape index: {}]
  %s4 = inlined_call_operand.hbm [shape: f32[1,2,4], index: 4, kind: output, shape index: {}]
  %s5 = sld [smem:[#allocation0]]
  $region46: #{tpu_custom_call.1} parent=0
    _
  %s7 = ssub.s32 1, %s5
  %s8 = scalar_select 0, %s7, %s5
  $region1: #{tpu_custom_call.1} parent=0
    #allocation4 [shape = 'u8[8192]{0}', space=vmem, size = 0x2000, scoped, tag = 'input window, operand 0, single buffered']
    #allocation5 [shape = 's32[1]{0}', space=sflag, size = 0x4, scoped, tag = 'scoped memory for tpu_custom_call.1']
    #allocation6 [shape = 's32[1]{0}', space=sflag, size = 0x4, scoped, tag = 'scoped memory for tpu_custom_call.1']
    #allocation7 [shape = 'u8[2048]{0}', space=vmem, size = 0x800, scoped, tag = 'input window, operand 1, single buffered']
    #allocation8 [shape = 's32[1]{0}', space=sflag, size = 0x4, scoped, tag = 'scoped memory for tpu_custom_call.1']
    #allocation9 [shape = 'u8[2048]{0}', space=vmem, size = 0x800, scoped, tag = 'input window, operand 2, single buffered']
    #allocation10 [shape = 'u8[1024]{0}', space=vmem, size = 0x400, scoped, tag = 'output window, operand 0, single buffered']
    %9 = vsyncpa [#allocation5], 0
    %10 = vsyncpa [#allocation8], 0
    %11 = vsyncpa [#allocation6], 0
    // Predicated region
    $region2: #{tpu_custom_call.1} parent=1 // pred_check
      _
    $region3: #{tpu_custom_call.1} parent=1 // pred_check_branch
      %13 = sbr.rel (0) target = $region5
    $region4: #{tpu_custom_call.1} parent=1 // pred_region
      %s15 = ssub.s32 256, 256
      %16 = vsyncadd [#allocation5], %s15
      %s17 = sshll.u32 [#allocation4], 4
      %s18 = int_to_ptr.vmem [resolvable:$true] %s17
      %23 = dma.hbm_to_vmem [thread:$0]  %s0, 256, %s18, [#allocation5], 128, 128, 8
    $region5: #{tpu_custom_call.1} parent=1 // pred_fallthru
      _
    // Predicated region
    $region6: #{tpu_custom_call.1} parent=1 // pred_check
      _
    $region7: #{tpu_custom_call.1} parent=1 // pred_check_branch
      %25 = sbr.rel (0) target = $region9
    $region8: #{tpu_custom_call.1} parent=1 // pred_region
      %s27 = ssub.s32 64, 64
      %28 = vsyncadd [#allocation8], %s27
      %s30 = sshll.u32 [#allocation7], 4
      %s31 = int_to_ptr.vmem [resolvable:$true] %s30
      %33 = dma.hbm_to_vmem [thread:$0]  %s1, 64, %s31, [#allocation8]
    $region9: #{tpu_custom_call.1} parent=1 // pred_fallthru
      _
    // Predicated region
    $region10: #{tpu_custom_call.1} parent=1 // pred_check
      _
    $region11: #{tpu_custom_call.1} parent=1 // pred_check_branch
      %35 = sbr.rel (0) target = $region13
    $region12: #{tpu_custom_call.1} parent=1 // pred_region
      %s37 = ssub.s32 64, 64
      %38 = vsyncadd [#allocation8], %s37
      %s40 = sshll.u32 [#allocation9], 4
      %s41 = int_to_ptr.vmem [resolvable:$true] %s40
      %43 = dma.hbm_to_vmem [thread:$0]  %s2, 64, %s41, [#allocation8]
    $region13: #{tpu_custom_call.1} parent=1 // pred_fallthru
      _
    // Predicated region
    $region14: #{tpu_custom_call.1} parent=1 // pred_check
      _
    $region15: #{tpu_custom_call.1} parent=1 // pred_check_branch
      %45 = sbr.rel (0) target = $region17
    $region16: #{tpu_custom_call.1} parent=1 // pred_region
      _
    $region17: #{tpu_custom_call.1} parent=1 // pred_fallthru
      _
    // Predicated region
    $region18: #{tpu_custom_call.1} parent=1 // pred_check
      _
    $region19: #{tpu_custom_call.1} parent=1 // pred_check_branch
      %47 = sbr.rel (0) target = $region21
    $region20: #{tpu_custom_call.1} parent=1 // pred_region
      %48 = dma.done [#allocation5], 256
    $region21: #{tpu_custom_call.1} parent=1 // pred_fallthru
      _
    // Predicated region
    $region22: #{tpu_custom_call.1} parent=1 // pred_check
      _
    $region23: #{tpu_custom_call.1} parent=1 // pred_check_branch
      %50 = sbr.rel (0) target = $region25
    $region24: #{tpu_custom_call.1} parent=1 // pred_region
      %51 = dma.done [#allocation8], 64
    $region25: #{tpu_custom_call.1} parent=1 // pred_fallthru
      _
    // Predicated region
    $region26: #{tpu_custom_call.1} parent=1 // pred_check
      _
    $region27: #{tpu_custom_call.1} parent=1 // pred_check_branch
      %53 = sbr.rel (0) target = $region29
    $region28: #{tpu_custom_call.1} parent=1 // pred_region
      %54 = dma.done [#allocation8], 64
    $region29: #{tpu_custom_call.1} parent=1 // pred_fallthru
      _
    %p55 = scmp.eq.s32.totalorder 0, 0
    // Predicated region
    $region30: #{tpu_custom_call.1} parent=1 // pred_check
      %p56 = pneg %p55
    $region31: #{tpu_custom_call.1} parent=1 // pred_check_branch
      %58 = sbr.rel (%p56) target = $region33
    $region32: #{tpu_custom_call.1} parent=1 // pred_region
      %59 = vst [vmem:[#allocation2] sm:$0xff] 0.0
      %60 = vst [vmem:[#allocation2 + $0x8] sm:$0xff] 0.0
      %61 = vst [vmem:[#allocation3] sm:$0xff] -inf
      %62 = vst [vmem:[#allocation3 + $0x8] sm:$0xff] -inf
    $region33: #{tpu_custom_call.1} parent=1 // pred_fallthru
      _
    %v63 = vld [vmem:[#allocation4] sm:$0xff]
    %v64 = vld [vmem:[#allocation4 + $0x8] sm:$0xff]
    %v65 = vld [vmem:[#allocation2] sm:$0xff]
    %v66 = vld [vmem:[#allocation2 + $0x8] sm:$0xff]
    %v67 = vadd.f32 %v65, %v63
    %v68 = vadd.f32 %v66, %v64
    %69 = vst [vmem:[#allocation2] sm:$0xff] %v67
    %70 = vst [vmem:[#allocation2 + $0x8] sm:$0xff] %v68
    %v71 = vld [vmem:[#allocation3] sm:$0xff]
    %v72 = vld [vmem:[#allocation3 + $0x8] sm:$0xff]
    %v73 = vmax.f32 %v71, %v63
    %v74 = vmax.f32 %v72, %v64
    %75 = vst [vmem:[#allocation3] sm:$0xff] %v73
    %76 = vst [vmem:[#allocation3 + $0x8] sm:$0xff] %v74
    // Predicated region
    $region34: #{tpu_custom_call.1} parent=1 // pred_check
      %p77 = pneg %p55
    $region35: #{tpu_custom_call.1} parent=1 // pred_check_branch
      %79 = sbr.rel (%p77) target = $region37
    $region36: #{tpu_custom_call.1} parent=1 // pred_region
      %v80 = vld [vmem:[#allocation2] sm:$0xff]
      %v81 = vld [vmem:[#allocation2 + $0x8] sm:$0xff]
      %v84 = vcombine.high %v80, %v80
      %v85 = vcombine.high %v81, %v81
      %vm88 = vcmask 1043456
      %v89 = vsel %vm88, %v80, 0.0
      %v90 = vsel %vm88, %v84, 0.0
      %v91 = vadd.f32 %v89, %v90
      %92 = vadd.xlane.f32.xlu0 %v91
      %v93 = vpop.xlane.xlu0 %92
      %v94 = vsel %vm88, %v81, 0.0
      %v95 = vsel %vm88, %v85, 0.0
      %v96 = vadd.f32 %v94, %v95
      %97 = vadd.xlane.f32.xlu0 %v96
      %v98 = vpop.xlane.xlu0 %97
      %v99 = vmul.f32 %v93, 0.00390625
      %v100 = vmul.f32 %v98, 0.00390625
      %v101 = vld [vmem:[#allocation3] sm:$0xff]
      %v102 = vld [vmem:[#allocation3 + $0x8] sm:$0xff]
      %v105 = vcombine.high %v101, %v101
      %v106 = vcombine.high %v102, %v102
      %v109 = vsel %vm88, %v101, -inf
      %v110 = vsel %vm88, %v105, -inf
      %v111 = vmax.f32 %v109, %v110
      %112 = vmax.xlane.f32.xlu0 %v111
      %v113 = vpop.xlane.xlu0 %112
      %v114 = vsel %vm88, %v102, -inf
      %v115 = vsel %vm88, %v106, -inf
      %v116 = vmax.f32 %v114, %v115
      %117 = vmax.xlane.f32.xlu0 %v116
      %v118 = vpop.xlane.xlu0 %117
      %v121 = vlaneseq
      %v122 = vand.u32 %v121, 127
      %v123 = vlaneseq
      %v124 = vshrl.u32 %v123, 7
      %v125 = vsub.s32 %v122, %v124
      %v126 = vrot.slane %v99, %v125
      %v127 = vlaneseq
      %v128 = vshrl.u32 %v127, 7
      %v129 = vsub.s32 %v122, %v128
      %v130 = vrot.slane %v100, %v129
      %vm131 = vcmask 1041409
      %v132 = vsel %vm131, %v130, %v126
      %v136 = vlaneseq
      %v137 = vshrl.u32 %v136, 7
      %v138 = vsub.s32 %v122, %v137
      %v139 = vrot.slane %v113, %v138
      %v140 = vlaneseq
      %v141 = vshrl.u32 %v140, 7
      %v142 = vsub.s32 %v122, %v141
      %v143 = vrot.slane %v118, %v142
      %vm144 = vcmask 1043459
      %v145 = vsel %vm144, %v143, %v139
      %vm147 = vcmask 1041408
      %v148 = vsel %vm147, %v132, %v145
      %v149 = vld [vmem:[#allocation7] sm:$0xf]
      %vm150 = vcmask 31744
      %v152 = vsel %vm150, %v148, 0
      %v155 = vsel %vm88, %v149, 0
      %157 = vmatprep.subr.mxu0 0.0
      %158 = vmatpush1.msra.mxu0 0.0
      %159 = vmatprep.subr.mxu0 0.0
      %160 = vmatpush1.msra.mxu0 0.0
      %161 = vmatprep.subr.mxu0 0.0
      %162 = vmatpush1.msra.mxu0 0.0
      %163 = vmatprep.subr.mxu0 0.0
      %164 = vmatpush1.msra.mxu0 0.0
      %165 = vmatprep.subr.mxu0 0.0
      %166 = vmatpush1.msra.mxu0 0.0
      %167 = vmatprep.subr.mxu0 0.0
      %168 = vmatpush1.msra.mxu0 0.0
      %169 = vmatprep.subr.mxu0 0.0
      %170 = vmatpush1.msra.mxu0 0.0
      %171 = vmatprep.subr.mxu0 0.0
      %172 = vmatpush1.msra.mxu0 0.0
      %173 = vmatprep.subr.mxu0 0.0
      %174 = vmatpush1.msra.mxu0 0.0
      %175 = vmatprep.subr.mxu0 0.0
      %176 = vmatpush1.msra.mxu0 0.0
      %177 = vmatprep.subr.mxu0 0.0
      %178 = vmatpush1.msra.mxu0 0.0
      %179 = vmatprep.subr.mxu0 0.0
      %180 = vmatpush1.msra.mxu0 0.0
      %181 = vmatprep.subr.mxu0 0.0
      %182 = vmatpush1.msra.mxu0 0.0
      %183 = vmatprep.subr.mxu0 0.0
      %184 = vmatpush1.msra.mxu0 0.0
      %185 = vmatprep.subr.mxu0 0.0
      %186 = vmatpush1.msra.mxu0 0.0
      %187 = vmatprep.subr.mxu0 0.0
      %188 = vmatpush1.msra.mxu0 %v155
      %189 = vmatprep.subr.mxu0 0.0
      %190 = vmatpush2.msra.mxu0 0.0
      %191 = vmatprep.subr.mxu0 0.0
      %192 = vmatpush2.msra.mxu0 0.0
      %193 = vmatprep.subr.mxu0 0.0
      %194 = vmatpush2.msra.mxu0 0.0
      %195 = vmatprep.subr.mxu0 0.0
      %196 = vmatpush2.msra.mxu0 0.0
      %197 = vmatprep.subr.mxu0 0.0
      %198 = vmatpush2.msra.mxu0 0.0
      %199 = vmatprep.subr.mxu0 0.0
      %200 = vmatpush2.msra.mxu0 0.0
      %201 = vmatprep.subr.mxu0 0.0
      %202 = vmatpush2.msra.mxu0 0.0
      %203 = vmatprep.subr.mxu0 0.0
      %204 = vmatpush2.msra.mxu0 0.0
      %205 = vmatprep.subr.mxu0 0.0
      %206 = vmatpush2.msra.mxu0 0.0
      %207 = vmatprep.subr.mxu0 0.0
      %208 = vmatpush2.msra.mxu0 0.0
      %209 = vmatprep.subr.mxu0 0.0
      %210 = vmatpush2.msra.mxu0 0.0
      %211 = vmatprep.subr.mxu0 0.0
      %212 = vmatpush2.msra.mxu0 0.0
      %213 = vmatprep.subr.mxu0 0.0
      %214 = vmatpush2.msra.mxu0 0.0
      %215 = vmatprep.subr.mxu0 0.0
      %216 = vmatpush2.msra.mxu0 0.0
      %217 = vmatprep.subr.mxu0 0.0
      %218 = vmatpush2.msra.mxu0 0.0
      %219 = vmatprep.subr.mxu0 0.0
      %220 = vmatpush2.msra.mxu0 0.0
      %221 = vmatprep.mubr.f32.mxu0 0.0
      %222 = vmatmul.mubr.f32.gmra.mxu0 %v152
      %v223 = vpop.f32.mrf.mxu0
      %v224 = vadd.f32 0.0, %v223
      %v225 = vpop.f32.mrf.mxu0
      %226 = vdwg.mxu0
      %v227 = vmax.f32 %v224, 0.0
      %v228 = vld [vmem:[#allocation9] sm:$0xf]
      %v230 = vsel %vm150, %v227, 0
      %v233 = vsel %vm88, %v228, 0
      %235 = vmatprep.subr.mxu0 0.0
      %236 = vmatpush1.msra.mxu0 0.0
      %237 = vmatprep.subr.mxu0 0.0
      %238 = vmatpush1.msra.mxu0 0.0
      %239 = vmatprep.subr.mxu0 0.0
      %240 = vmatpush1.msra.mxu0 0.0
      %241 = vmatprep.subr.mxu0 0.0
      %242 = vmatpush1.msra.mxu0 0.0
      %243 = vmatprep.subr.mxu0 0.0
      %244 = vmatpush1.msra.mxu0 0.0
      %245 = vmatprep.subr.mxu0 0.0
      %246 = vmatpush1.msra.mxu0 0.0
      %247 = vmatprep.subr.mxu0 0.0
      %248 = vmatpush1.msra.mxu0 0.0
      %249 = vmatprep.subr.mxu0 0.0
      %250 = vmatpush1.msra.mxu0 0.0
      %251 = vmatprep.subr.mxu0 0.0
      %252 = vmatpush1.msra.mxu0 0.0
      %253 = vmatprep.subr.mxu0 0.0
      %254 = vmatpush1.msra.mxu0 0.0
      %255 = vmatprep.subr.mxu0 0.0
      %256 = vmatpush1.msra.mxu0 0.0
      %257 = vmatprep.subr.mxu0 0.0
      %258 = vmatpush1.msra.mxu0 0.0
      %259 = vmatprep.subr.mxu0 0.0
      %260 = vmatpush1.msra.mxu0 0.0
      %261 = vmatprep.subr.mxu0 0.0
      %262 = vmatpush1.msra.mxu0 0.0
      %263 = vmatprep.subr.mxu0 0.0
      %264 = vmatpush1.msra.mxu0 0.0
      %265 = vmatprep.subr.mxu0 0.0
      %266 = vmatpush1.msra.mxu0 %v233
      %267 = vmatprep.subr.mxu0 0.0
      %268 = vmatpush2.msra.mxu0 0.0
      %269 = vmatprep.subr.mxu0 0.0
      %270 = vmatpush2.msra.mxu0 0.0
      %271 = vmatprep.subr.mxu0 0.0
      %272 = vmatpush2.msra.mxu0 0.0
      %273 = vmatprep.subr.mxu0 0.0
      %274 = vmatpush2.msra.mxu0 0.0
      %275 = vmatprep.subr.mxu0 0.0
      %276 = vmatpush2.msra.mxu0 0.0
      %277 = vmatprep.subr.mxu0 0.0
      %278 = vmatpush2.msra.mxu0 0.0
      %279 = vmatprep.subr.mxu0 0.0
      %280 = vmatpush2.msra.mxu0 0.0
      %281 = vmatprep.subr.mxu0 0.0
      %282 = vmatpush2.msra.mxu0 0.0
      %283 = vmatprep.subr.mxu0 0.0
      %284 = vmatpush2.msra.mxu0 0.0
      %285 = vmatprep.subr.mxu0 0.0
      %286 = vmatpush2.msra.mxu0 0.0
      %287 = vmatprep.subr.mxu0 0.0
      %288 = vmatpush2.msra.mxu0 0.0
      %289 = vmatprep.subr.mxu0 0.0
      %290 = vmatpush2.msra.mxu0 0.0
      %291 = vmatprep.subr.mxu0 0.0
      %292 = vmatpush2.msra.mxu0 0.0
      %293 = vmatprep.subr.mxu0 0.0
      %294 = vmatpush2.msra.mxu0 0.0
      %295 = vmatprep.subr.mxu0 0.0
      %296 = vmatpush2.msra.mxu0 0.0
      %297 = vmatprep.subr.mxu0 0.0
      %298 = vmatpush2.msra.mxu0 0.0
      %299 = vmatprep.mubr.f32.mxu0 0.0
      %300 = vmatmul.mubr.f32.gmra.mxu0 %v230
      %v301 = vpop.f32.mrf.mxu0
      %v302 = vadd.f32 0.0, %v301
      %v303 = vpop.f32.mrf.mxu0
      %304 = vdwg.mxu0
      %v305 = vld [vmem:[%s3] sm:$0x3]
      %v306 = vlaneseq
      %v307 = vshrl.u32 %v306, 7
      %v308 = vsub.s32 0, %v307
      %v309 = vrot.slane %v305, %v308
      %v310 = vmul.f32 %v302, %v309
      %v311 = vlaneseq
      %v312 = vshrl.u32 %v311, 7
      %v313 = vsub.s32 1, %v312
      %v314 = vrot.slane %v305, %v313
      %v315 = vmul.f32 %v302, %v314
      %v317 = vrot.slane %v315, 2
      %v319 = vadd.f32 %v310, %v317
      %v320 = vxor.u32 %v319, 2147483648
      %v321 = vmul.f32 %v320, 1.442695
      %v322 = vpow.pop %v321
      %v323 = vadd.f32 %v322, 1.0
      %v324 = vrcp.pop %v323
      %v325 = vmul.f32 1.0, %v324
      %vm326 = vcmask 25600
      %327 = vst.msk [vmem:[#allocation10] sm:$0x3] %vm326, %v325
    $region37: #{tpu_custom_call.1} parent=1 // pred_fallthru
      _
    // Predicated region
    $region38: #{tpu_custom_call.1} parent=1 // pred_check
      _
    $region39: #{tpu_custom_call.1} parent=1 // pred_check_branch
      %329 = sbr.rel (0) target = $region41
    $region40: #{tpu_custom_call.1} parent=1 // pred_region
      %s331 = ssub.s32 32, 32
      %332 = vsyncadd [#allocation6], %s331
      %s334 = sshll.u32 [#allocation10], 4
      %s335 = int_to_ptr.vmem [resolvable:$true] %s334
      %337 = dma.vmem_to_hbm [thread:$0]  %s335, 32, %s4, [#allocation6]
    $region41: #{tpu_custom_call.1} parent=1 // pred_fallthru
      _
    // Predicated region
    $region42: #{tpu_custom_call.1} parent=1 // pred_check
      _
    $region43: #{tpu_custom_call.1} parent=1 // pred_check_branch
      %339 = sbr.rel (0) target = $region45
    $region44: #{tpu_custom_call.1} parent=1 // pred_region
      %340 = dma.done [#allocation6], 32
    $region45: #{tpu_custom_call.1} parent=1 // pred_fallthru
      _
    %341 = vsyncpa [#allocation5], 1
    %342 = vsyncpa [#allocation8], 1
    %343 = vsyncpa [#allocation6], 1

</llo_original>
